<compile_context>
chip_gen: v5e
topology: v5e:2x2
jax: 0.10.0
libtpu: 0.0.40
codegen_flags: <defaults>
</compile_context>

<pallas_src>
import jax
import jax.numpy as jnp
from jax.experimental import pallas as pl
from jax.experimental.pallas import tpu as pltpu


R_variable = {
    'full_net': [2, 32, 32, 1],   # layer widths, as in the PyTorch spec
    'ActFuc': 1,                  # 0: relu, 1: tanh, 2: sin, 3: x**50, 4: sigmoid
}


def _activation(code):
    if code == 0:
        return lambda v: jnp.maximum(v, 0.0)
    if code == 1:
        return jnp.tanh
    if code == 2:
        return jnp.sin
    if code == 3:
        return lambda v: v ** 50        # Act_op
    if code == 4:
        return jax.nn.sigmoid
    return jnp.tanh


def _make_mlp_kernel(num_layers, act_code):
    """Build a fused feature-major MLP kernel for `num_layers` nn.Linear layers."""
    act = _activation(act_code)

    def kernel(xT_ref, *refs):
        # refs = (w0^T, b0^T, w1^T, b1^T, ..., o_ref); all weights are [out_i, in_i],
        # biases [out_i, 1], activations/hidden states [feat, tile_b] (batch on lanes).
        o_ref = refs[-1]
        h = xT_ref[...]                                   # [d_in, tile_b]
        for li in range(num_layers):                      # static Python unroll
            wt = refs[2 * li][...]                        # [out_i, in_i]
            bt = refs[2 * li + 1][...]                    # [out_i, 1]
            out_i, in_i = wt.shape
            last = (li == num_layers - 1)
            if in_i <= 4:
                # Tiny contraction dim: broadcast MACs on the VPU, skip the MXU.
                z = wt[:, 0:1] * h[0:1, :]
                for k in range(1, in_i):
                    z = z + wt[:, k:k + 1] * h[k:k + 1, :]
            elif last and out_i == 1:
                # Single output feature: VPU multiply + sublane reduce, skip the MXU.
                z = jnp.sum(wt.T * h, axis=0, keepdims=True)
            else:
                # Proper matmul (e.g. the 32x32 hidden layer) on the MXU.
                z = jnp.dot(wt, h, preferred_element_type=jnp.float32)
            z = z + bt                                    # lane-broadcast bias
            h = z if last else act(z)                     # tanh -> EUP slot
        o_ref[...] = h.astype(o_ref.dtype)                # lane-dense store

    return kernel


def mlp_forward(x, params, *, act_code=R_variable['ActFuc'], tile_b=2048):
    """Forward pass of `Network`.

    x      : [N, d_in] float32
    params : list of (W [in, out], b [1, out]) per nn.Linear (PyTorch order/semantics)
    tile_b : batch tile on the lane axis (multiple of 128); sweep 2048-8192 for large
             collocation batches. Keep grid = ceil(N / tile_b) >= 2 on v7x so the
             "parallel" batch axis shards across both TensorCores.
    """
    assert tile_b % 128 == 0, "tile_b must be a multiple of 128 (lane width)"
    N, d_in = x.shape
    d_out = params[-1][0].shape[1]
    num_layers = len(params)

    grid_n = pl.cdiv(N, tile_b)
    n_pad = grid_n * tile_b

    # Feature-major: batch on the (fast) lane axis; pad batch to a tile multiple.
    xT = x.T                                              # [d_in, N]
    if n_pad != N:
        xT = jnp.pad(xT, ((0, 0), (0, n_pad - N)))

    flat_params = []
    in_specs = [pl.BlockSpec((d_in, tile_b), lambda i: (0, i))]   # x^T tile, lane-dense
    for (w, b) in params:
        wt = w.T                                          # [out, in]
        bt = b.T                                          # [out, 1]
        flat_params += [wt, bt]
        # Full-array blocks: valid regardless of (8,128) tiling, resident across grid.
        in_specs += [pl.BlockSpec(wt.shape, lambda i: (0, 0)),
                     pl.BlockSpec(bt.shape, lambda i: (0, 0))]

    out_T = pl.pallas_call(
        _make_mlp_kernel(num_layers, act_code),
        out_shape=jax.ShapeDtypeStruct((d_out, n_pad), jnp.float32),
        grid_spec=pltpu.PrefetchScalarGridSpec(
            num_scalar_prefetch=0,
            grid=(grid_n,),
            in_specs=in_specs,
            out_specs=pl.BlockSpec((d_out, tile_b), lambda i: (0, i)),  # lane-dense store
        ),
        compiler_params=pltpu.CompilerParams(
            dimension_semantics=("parallel",),
            # VMEM use is ~tile_b * (d_in + d_out) * 4 B double-buffered (< 1 MiB at
            # tile_b = 2048); only set vmem_limit_bytes if tile_b is pushed toward 16k+.
        ),
    )(xT, *flat_params)

    # Back to the PyTorch layout [N, d_out]; drop padded columns.
    return out_T.T[:N]


def init_params(key, full_net):
    """Deterministic init mimicking torch.nn.Linear default:
    U(-1/sqrt(fan_in), 1/sqrt(fan_in)). Weights stored as [in, out]."""
    params = []
    for i in range(len(full_net) - 1):
        fan_in, fan_out = full_net[i], full_net[i + 1]
        key, kw, kb = jax.random.split(key, 3)
        bound = 1.0 / jnp.sqrt(jnp.float32(fan_in))
        w = jax.random.uniform(kw, (fan_in, fan_out), jnp.float32, -bound, bound)
        b = jax.random.uniform(kb, (1, fan_out), jnp.float32, -bound, bound)
        params.append((w, b))
    return params


def mlp_reference(x, params, act_code=R_variable['ActFuc']):
    """Pure-JAX reference matching the PyTorch Network.forward semantics."""
    act = _activation(act_code)
    h = x
    for i, (w, b) in enumerate(params):
        h = h @ w + b
        if i < len(params) - 1:
            h = act(h)
    return h


if __name__ == "__main__":
    key = jax.random.PRNGKey(0)
    key, kx = jax.random.split(key)

    # Small demo batch of collocation points; NOT a multiple of the tile to exercise
    # padding, and grid > 1 so the "parallel" batch axis can use both TCs on v7x.
    N = 1000
    x = jax.random.uniform(kx, (N, R_variable['full_net'][0]), jnp.float32, -1.0, 1.0)

    params = init_params(key, R_variable['full_net'])

    out = mlp_forward(x, params, tile_b=256)   # production: leave the default tile_b=2048
    out = jax.block_until_ready(out)

    ref = mlp_reference(x, params)
    assert out.shape == (N, R_variable['full_net'][-1])
    assert jnp.allclose(out, ref, atol=1e-5, rtol=1e-5), "mismatch vs reference"

    print("KERNEL_OK")
</pallas_src>

<mosaic_0001>
module attributes {stable_mosaic.version = 11 : i64} {
  func.func @kernel(%arg0: i32, %arg1: memref<2x256xf32, #tpu.memory_space<vmem>>, %arg2: memref<32x2xf32, #tpu.memory_space<vmem>>, %arg3: memref<32x1xf32, #tpu.memory_space<vmem>>, %arg4: memref<32x32xf32, #tpu.memory_space<vmem>>, %arg5: memref<32x1xf32, #tpu.memory_space<vmem>>, %arg6: memref<1x32xf32, #tpu.memory_space<vmem>>, %arg7: memref<1x1xf32, #tpu.memory_space<vmem>>, %arg8: memref<1x256xf32, #tpu.memory_space<vmem>>) attributes {dimension_semantics = [#tpu.dimension_semantics<parallel>], iteration_bounds = array<i64: 4>, scalar_prefetch = 0 : i64, scratch_operands = 0 : i64, tpu.core_type = #tpu.core_type<tc>, window_params = [{transform_indices = @transform_0, window_bounds = array<i64: 2, 256>}, {pipeline_mode = #tpu.pipeline_mode<synchronous>, transform_indices = @transform_1, window_bounds = array<i64: 32, 2>}, {pipeline_mode = #tpu.pipeline_mode<synchronous>, transform_indices = @transform_2, window_bounds = array<i64: 32, 1>}, {pipeline_mode = #tpu.pipeline_mode<synchronous>, transform_indices = @transform_3, window_bounds = array<i64: 32, 32>}, {pipeline_mode = #tpu.pipeline_mode<synchronous>, transform_indices = @transform_4, window_bounds = array<i64: 32, 1>}, {pipeline_mode = #tpu.pipeline_mode<synchronous>, transform_indices = @transform_5, window_bounds = array<i64: 1, 32>}, {pipeline_mode = #tpu.pipeline_mode<synchronous>, transform_indices = @transform_6, window_bounds = array<i64: 1, 1>}, {transform_indices = @transform_7, window_bounds = array<i64: 1, 256>}]} {
    %c0 = arith.constant 0 : index
    %c0_0 = arith.constant 0 : index
    %0 = vector.load %arg1[%c0, %c0_0] : memref<2x256xf32, #tpu.memory_space<vmem>>, vector<2x256xf32>
    %c0_1 = arith.constant 0 : index
    %c0_2 = arith.constant 0 : index
    %1 = vector.load %arg2[%c0_1, %c0_2] : memref<32x2xf32, #tpu.memory_space<vmem>>, vector<32x2xf32>
    %c0_3 = arith.constant 0 : index
    %c0_4 = arith.constant 0 : index
    %2 = vector.load %arg3[%c0_3, %c0_4] : memref<32x1xf32, #tpu.memory_space<vmem>>, vector<32x1xf32>
    %3 = vector.extract_strided_slice %1 {offsets = [0, 0], sizes = [32, 1], strides = [1, 1]} : vector<32x2xf32> to vector<32x1xf32>
    %4 = vector.extract_strided_slice %0 {offsets = [0, 0], sizes = [1, 256], strides = [1, 1]} : vector<2x256xf32> to vector<1x256xf32>
    %5 = vector.broadcast %3 : vector<32x1xf32> to vector<32x256xf32>
    %6 = vector.broadcast %4 : vector<1x256xf32> to vector<32x256xf32>
    %7 = arith.mulf %5, %6 : vector<32x256xf32>
    %8 = vector.extract_strided_slice %1 {offsets = [0, 1], sizes = [32, 1], strides = [1, 1]} : vector<32x2xf32> to vector<32x1xf32>
    %9 = vector.extract_strided_slice %0 {offsets = [1, 0], sizes = [1, 256], strides = [1, 1]} : vector<2x256xf32> to vector<1x256xf32>
    %10 = vector.broadcast %8 : vector<32x1xf32> to vector<32x256xf32>
    %11 = vector.broadcast %9 : vector<1x256xf32> to vector<32x256xf32>
    %12 = arith.mulf %10, %11 : vector<32x256xf32>
    %13 = arith.addf %7, %12 : vector<32x256xf32>
    %14 = vector.broadcast %2 : vector<32x1xf32> to vector<32x256xf32>
    %15 = arith.addf %13, %14 : vector<32x256xf32>
    %16 = math.tanh %15 : vector<32x256xf32>
    %c0_5 = arith.constant 0 : index
    %c0_6 = arith.constant 0 : index
    %17 = vector.load %arg4[%c0_5, %c0_6] : memref<32x32xf32, #tpu.memory_space<vmem>>, vector<32x32xf32>
    %c0_7 = arith.constant 0 : index
    %c0_8 = arith.constant 0 : index
    %18 = vector.load %arg5[%c0_7, %c0_8] : memref<32x1xf32, #tpu.memory_space<vmem>>, vector<32x1xf32>
    %cst = arith.constant dense<0.000000e+00> : vector<32x256xf32>
    %19 = tpu.matmul %17, %16, %cst {dimension_numbers = #tpu.dot_dimension_numbers<[1], [0], [0], [1], [0, 0, 1, 1], [], []>} : vector<32x32xf32>, vector<32x256xf32>, vector<32x256xf32> -> vector<32x256xf32>
    %20 = vector.broadcast %18 : vector<32x1xf32> to vector<32x256xf32>
    %21 = arith.addf %19, %20 : vector<32x256xf32>
    %22 = math.tanh %21 : vector<32x256xf32>
    %c0_9 = arith.constant 0 : index
    %c0_10 = arith.constant 0 : index
    %23 = vector.load %arg6[%c0_9, %c0_10] : memref<1x32xf32, #tpu.memory_space<vmem>>, vector<1x32xf32>
    %c0_11 = arith.constant 0 : index
    %c0_12 = arith.constant 0 : index
    %24 = vector.load %arg7[%c0_11, %c0_12] : memref<1x1xf32, #tpu.memory_space<vmem>>, vector<1x1xf32>
    %25 = tpu.transpose %23, [1, 0] : vector<1x32xf32> -> vector<32x1xf32>
    %26 = vector.broadcast %25 : vector<32x1xf32> to vector<32x256xf32>
    %27 = arith.mulf %26, %22 : vector<32x256xf32>
    %cst_13 = arith.constant dense<0.000000e+00> : vector<256xf32>
    %28 = vector.multi_reduction <add>, %27, %cst_13 [0] : vector<32x256xf32> to vector<256xf32>
    %29 = vector.shape_cast %28 : vector<256xf32> to vector<1x256xf32>
    %30 = vector.broadcast %24 : vector<1x1xf32> to vector<1x256xf32>
    %31 = arith.addf %29, %30 : vector<1x256xf32>
    %c0_14 = arith.constant 0 : index
    %c0_15 = arith.constant 0 : index
    %32 = vector.load %arg8[%c0_14, %c0_15] : memref<1x256xf32, #tpu.memory_space<vmem>>, vector<1x256xf32>
    tpu.vector_store %arg8[%c0_14, %c0_15], %31 {strides = array<i32>} : memref<1x256xf32, #tpu.memory_space<vmem>>, vector<1x256xf32>,
    return
  }
  func.func @transform_0(%arg0: i32) -> (i32, i32) {
    %c0_i32 = arith.constant 0 : i32
    %c0_i32_0 = arith.constant 0 : i32
    return %c0_i32, %arg0 : i32, i32
  }
  func.func @transform_1(%arg0: i32) -> (i32, i32) {
    %c0_i32 = arith.constant 0 : i32
    %c0_i32_0 = arith.constant 0 : i32
    %c0_i32_1 = arith.constant 0 : i32
    return %c0_i32, %c0_i32_0 : i32, i32
  }
  func.func @transform_2(%arg0: i32) -> (i32, i32) {
    %c0_i32 = arith.constant 0 : i32
    %c0_i32_0 = arith.constant 0 : i32
    %c0_i32_1 = arith.constant 0 : i32
    return %c0_i32, %c0_i32_0 : i32, i32
  }
  func.func @transform_3(%arg0: i32) -> (i32, i32) {
    %c0_i32 = arith.constant 0 : i32
    %c0_i32_0 = arith.constant 0 : i32
    %c0_i32_1 = arith.constant 0 : i32
    return %c0_i32, %c0_i32_0 : i32, i32
  }
  func.func @transform_4(%arg0: i32) -> (i32, i32) {
    %c0_i32 = arith.constant 0 : i32
    %c0_i32_0 = arith.constant 0 : i32
    %c0_i32_1 = arith.constant 0 : i32
    return %c0_i32, %c0_i32_0 : i32, i32
  }
  func.func @transform_5(%arg0: i32) -> (i32, i32) {
    %c0_i32 = arith.constant 0 : i32
    %c0_i32_0 = arith.constant 0 : i32
    %c0_i32_1 = arith.constant 0 : i32
    return %c0_i32, %c0_i32_0 : i32, i32
  }
  func.func @transform_6(%arg0: i32) -> (i32, i32) {
    %c0_i32 = arith.constant 0 : i32
    %c0_i32_0 = arith.constant 0 : i32
    %c0_i32_1 = arith.constant 0 : i32
    return %c0_i32, %c0_i32_0 : i32, i32
  }
  func.func @transform_7(%arg0: i32) -> (i32, i32) {
    %c0_i32 = arith.constant 0 : i32
    %c0_i32_0 = arith.constant 0 : i32
    return %c0_i32, %arg0 : i32, i32
  }
}

</mosaic_0001>

<llo_original>
// kernel: tpu_custom_call.1
$region0: #{tpu_custom_call.1}
  #allocation0 [shape = 'u32[]', space=smem, size = 0x4, offset = 0x4, fixed_abs, tag = 'smem constant byte address 0x4 - core index']
  #allocation1 [shape = 'u32[72,128]{1,0:T(1,128)}', space=vmem, size = 0x9000, scoped, tag = 'internal scratch']
  #allocation2 [shape = 'f32[1,1]{1,0:T(1,128)S(1)}', space=vmem, size = 0x200, scoped, tag = 'scoped memory for tpu_custom_call.1']
  %s0 = inlined_call_operand.vmem [shape: f32[2,1024], index: 0, kind: input, shape index: {}]
  %s1 = inlined_call_operand.vmem [shape: f32[32,2], index: 1, kind: input, shape index: {}]
  %s2 = inlined_call_operand.vmem [shape: f32[32,1], index: 2, kind: input, shape index: {}]
  %s3 = inlined_call_operand.vmem [shape: f32[32,32], index: 3, kind: input, shape index: {}]
  %s4 = inlined_call_operand.vmem [shape: f32[32,1], index: 4, kind: input, shape index: {}]
  %s5 = inlined_call_operand.vmem [shape: f32[1,32], index: 5, kind: input, shape index: {}]
  %s6 = inlined_call_operand.<no memory space> [shape: f32[1,1], index: 6, kind: input, shape index: {}]
  %s7 = inlined_call_operand.hbm [shape: f32[1,1024], index: 7, kind: output, shape index: {}]
  %s8 = sld [smem:[#allocation0]]
  $region61: #{tpu_custom_call.1} parent=0
    _
  %s10 = ssub.s32 1, %s8
  %s11 = scalar_select 0, %s10, %s8
  %v12 = vstv %s6
  %13 = vst [vmem:[#allocation2] sm:$0x1] %v12
  $region1: #{tpu_custom_call.1} parent=0
    #allocation3 [shape = 'u8[2048]{0}', space=vmem, size = 0x800, scoped, tag = 'output window, operand 0']
    #allocation4 [shape = 's32[2]{0}', space=sflag, size = 0x8, scoped, tag = 'scoped memory for tpu_custom_call.1']
    %14 = vsyncpa [#allocation4], 0
    %s15 = scalar_lea.sflag [#allocation4], 1
    %16 = vsyncpa %s15, 0
    loop: start=0, step=1, limit=6
    $region2: #{tpu_custom_call.1} parent=1 // loop_pre_header
      _
    $region3: #{tpu_custom_call.1} parent=1 // loop_header
      %s18 = sphi 0, %s22
      %p19 = scmp.ge.s32.totalorder %s18, 6
      %s28 = sphi 0, %s30
      %s31 = sphi 0, %s28
      %s32 = sphi 0, %s31
      %s48 = sphi 0, %s32
      %s52 = sphi 0, %s52
      %s54 = sphi 0, %s52
      %s55 = sphi 0, %s54
      %s69 = sphi 0, %s55
      %s73 = sphi 0, %s73
      %s75 = sphi 0, %s73
      %s76 = sphi 0, %s75
      %s90 = sphi 0, %s76
      %s94 = sphi 0, %s94
      %s96 = sphi 0, %s94
      %s97 = sphi 0, %s96
      %s111 = sphi 0, %s97
      %s115 = sphi 0, %s115
      %s117 = sphi 0, %s115
      %s118 = sphi 0, %s117
      %s132 = sphi 0, %s118
      %s136 = sphi 0, %s136
      %s138 = sphi 0, %s136
      %s139 = sphi 0, %s138
      %s153 = sphi 0, %s139
      %s157 = sphi 0, %s157
      %s159 = sphi 0, %s157
      %s160 = sphi 0, %s159
      %s174 = sphi 0, %s160
      %s180 = sphi 0, %s182
      %s183 = sphi 0, %s180
      %s184 = sphi 0, %s183
      %s200 = sphi 0, %s184
    $region4: #{tpu_custom_call.1} parent=1 // loop_header_branch
      %21 = sbr.rel (%p19) target = $region8
    $region5: #{tpu_custom_call.1} parent=1 // loop_body
      %s23 = ssub.s32 %s18, 1
      %s24 = ssub.s32 %s18, 2
      %s25 = sadd.s32 %s18, 1
      %s26 = ssub.s32 %s18, %s25
      %p27 = scmp.eq.s32.totalorder %s26, 0
      %s29 = sadd.s32 %s28, 1
      %s30 = scalar_select %p27, %s28, %s29
      %p33 = pneg %p27
      %p34 = scmp.eq.s32.totalorder %s18, 3
      %p35 = por %p33, %p34
      %p36 = scmp.ne.s32.totalorder %s28, %s31
      %p37 = scmp.eq.s32.totalorder %s18, 0
      %p38 = por %p36, %p37
      %p39 = scmp.ne.s32.totalorder %s28, %s31
      %p40 = scmp.eq.s32.totalorder %s23, 3
      %p41 = por %p39, %p40
      %p42 = scmp.ne.s32.totalorder %s31, %s32
      %p43 = scmp.eq.s32.totalorder %s23, 0
      %p44 = por %p42, %p43
      %p45 = scmp.ne.s32.totalorder %s31, %s32
      %p46 = scmp.eq.s32.totalorder %s24, 3
      %p47 = por %p45, %p46
      %p49 = scmp.ne.s32.totalorder %s32, %s48
      %p50 = scmp.eq.s32.totalorder %s24, 0
      %p51 = por %p49, %p50
      %s53 = sadd.s32 %s52, 1
      %p56 = scmp.eq.s32.totalorder %s18, 3
      %p57 = scmp.ne.s32.totalorder %s52, %s54
      %p58 = scmp.eq.s32.totalorder %s18, 0
      %p59 = por %p57, %p58
      %p60 = scmp.ne.s32.totalorder %s52, %s54
      %p61 = scmp.eq.s32.totalorder %s23, 3
      %p62 = por %p60, %p61
      %p63 = scmp.ne.s32.totalorder %s54, %s55
      %p64 = scmp.eq.s32.totalorder %s23, 0
      %p65 = por %p63, %p64
      %p66 = scmp.ne.s32.totalorder %s54, %s55
      %p67 = scmp.eq.s32.totalorder %s24, 3
      %p68 = por %p66, %p67
      %p70 = scmp.ne.s32.totalorder %s55, %s69
      %p71 = scmp.eq.s32.totalorder %s24, 0
      %p72 = por %p70, %p71
      %s74 = sadd.s32 %s73, 1
      %p77 = scmp.eq.s32.totalorder %s18, 3
      %p78 = scmp.ne.s32.totalorder %s73, %s75
      %p79 = scmp.eq.s32.totalorder %s18, 0
      %p80 = por %p78, %p79
      %p81 = scmp.ne.s32.totalorder %s73, %s75
      %p82 = scmp.eq.s32.totalorder %s23, 3
      %p83 = por %p81, %p82
      %p84 = scmp.ne.s32.totalorder %s75, %s76
      %p85 = scmp.eq.s32.totalorder %s23, 0
      %p86 = por %p84, %p85
      %p87 = scmp.ne.s32.totalorder %s75, %s76
      %p88 = scmp.eq.s32.totalorder %s24, 3
      %p89 = por %p87, %p88
      %p91 = scmp.ne.s32.totalorder %s76, %s90
      %p92 = scmp.eq.s32.totalorder %s24, 0
      %p93 = por %p91, %p92
      %s95 = sadd.s32 %s94, 1
      %p98 = scmp.eq.s32.totalorder %s18, 3
      %p99 = scmp.ne.s32.totalorder %s94, %s96
      %p100 = scmp.eq.s32.totalorder %s18, 0
      %p101 = por %p99, %p100
      %p102 = scmp.ne.s32.totalorder %s94, %s96
      %p103 = scmp.eq.s32.totalorder %s23, 3
      %p104 = por %p102, %p103
      %p105 = scmp.ne.s32.totalorder %s96, %s97
      %p106 = scmp.eq.s32.totalorder %s23, 0
      %p107 = por %p105, %p106
      %p108 = scmp.ne.s32.totalorder %s96, %s97
      %p109 = scmp.eq.s32.totalorder %s24, 3
      %p110 = por %p108, %p109
      %p112 = scmp.ne.s32.totalorder %s97, %s111
      %p113 = scmp.eq.s32.totalorder %s24, 0
      %p114 = por %p112, %p113
      %s116 = sadd.s32 %s115, 1
      %p119 = scmp.eq.s32.totalorder %s18, 3
      %p120 = scmp.ne.s32.totalorder %s115, %s117
      %p121 = scmp.eq.s32.totalorder %s18, 0
      %p122 = por %p120, %p121
      %p123 = scmp.ne.s32.totalorder %s115, %s117
      %p124 = scmp.eq.s32.totalorder %s23, 3
      %p125 = por %p123, %p124
      %p126 = scmp.ne.s32.totalorder %s117, %s118
      %p127 = scmp.eq.s32.totalorder %s23, 0
      %p128 = por %p126, %p127
      %p129 = scmp.ne.s32.totalorder %s117, %s118
      %p130 = scmp.eq.s32.totalorder %s24, 3
      %p131 = por %p129, %p130
      %p133 = scmp.ne.s32.totalorder %s118, %s132
      %p134 = scmp.eq.s32.totalorder %s24, 0
      %p135 = por %p133, %p134
      %s137 = sadd.s32 %s136, 1
      %p140 = scmp.eq.s32.totalorder %s18, 3
      %p141 = scmp.ne.s32.totalorder %s136, %s138
      %p142 = scmp.eq.s32.totalorder %s18, 0
      %p143 = por %p141, %p142
      %p144 = scmp.ne.s32.totalorder %s136, %s138
      %p145 = scmp.eq.s32.totalorder %s23, 3
      %p146 = por %p144, %p145
      %p147 = scmp.ne.s32.totalorder %s138, %s139
      %p148 = scmp.eq.s32.totalorder %s23, 0
      %p149 = por %p147, %p148
      %p150 = scmp.ne.s32.totalorder %s138, %s139
      %p151 = scmp.eq.s32.totalorder %s24, 3
      %p152 = por %p150, %p151
      %p154 = scmp.ne.s32.totalorder %s139, %s153
      %p155 = scmp.eq.s32.totalorder %s24, 0
      %p156 = por %p154, %p155
      %s158 = sadd.s32 %s157, 1
      %p161 = scmp.eq.s32.totalorder %s18, 3
      %p162 = scmp.ne.s32.totalorder %s157, %s159
      %p163 = scmp.eq.s32.totalorder %s18, 0
      %p164 = por %p162, %p163
      %p165 = scmp.ne.s32.totalorder %s157, %s159
      %p166 = scmp.eq.s32.totalorder %s23, 3
      %p167 = por %p165, %p166
      %p168 = scmp.ne.s32.totalorder %s159, %s160
      %p169 = scmp.eq.s32.totalorder %s23, 0
      %p170 = por %p168, %p169
      %p171 = scmp.ne.s32.totalorder %s159, %s160
      %p172 = scmp.eq.s32.totalorder %s24, 3
      %p173 = por %p171, %p172
      %p175 = scmp.ne.s32.totalorder %s160, %s174
      %p176 = scmp.eq.s32.totalorder %s24, 0
      %p177 = por %p175, %p176
      %s178 = ssub.s32 %s18, %s25
      %p179 = scmp.eq.s32.totalorder %s178, 0
      %s181 = sadd.s32 %s180, 1
      %s182 = scalar_select %p179, %s180, %s181
      %p185 = pneg %p179
      %p186 = scmp.eq.s32.totalorder %s18, 3
      %p187 = por %p185, %p186
      %p188 = scmp.ne.s32.totalorder %s180, %s183
      %p189 = scmp.eq.s32.totalorder %s18, 0
      %p190 = por %p188, %p189
      %p191 = scmp.ne.s32.totalorder %s180, %s183
      %p192 = scmp.eq.s32.totalorder %s23, 3
      %p193 = por %p191, %p192
      %p194 = scmp.ne.s32.totalorder %s183, %s184
      %p195 = scmp.eq.s32.totalorder %s23, 0
      %p196 = por %p194, %p195
      %p197 = scmp.ne.s32.totalorder %s183, %s184
      %p198 = scmp.eq.s32.totalorder %s24, 3
      %p199 = por %p197, %p198
      %p201 = scmp.ne.s32.totalorder %s184, %s200
      %p202 = scmp.eq.s32.totalorder %s24, 0
      %p203 = por %p201, %p202
      %p204 = scmp.le.s32.totalorder 1, %s18
      %p205 = scmp.lt.s32.totalorder %s18, 5
      %p206 = pnand %p204, %p205
      %p207 = pneg %p206
      // Predicated region
      $region9: #{tpu_custom_call.1} parent=5 // pred_check
        _
      $region10: #{tpu_custom_call.1} parent=5 // pred_check_branch
        %209 = sbr.rel (%p206) target = $region12
      $region11: #{tpu_custom_call.1} parent=5 // pred_region
        %s210 = ssub.s32 %s18, 1
        // Predicated region
        $region13: #{tpu_custom_call.1} parent=11 // pred_check
          %p211 = pneg %p65
        $region14: #{tpu_custom_call.1} parent=11 // pred_check_branch
          %213 = sbr.rel (%p211) target = $region16
        $region15: #{tpu_custom_call.1} parent=11 // pred_region
          _
        $region16: #{tpu_custom_call.1} parent=11 // pred_fallthru
          _
        // Predicated region
        $region17: #{tpu_custom_call.1} parent=11 // pred_check
          %p214 = pneg %p86
        $region18: #{tpu_custom_call.1} parent=11 // pred_check_branch
          %216 = sbr.rel (%p214) target = $region20
        $region19: #{tpu_custom_call.1} parent=11 // pred_region
          _
        $region20: #{tpu_custom_call.1} parent=11 // pred_fallthru
          _
        // Predicated region
        $region21: #{tpu_custom_call.1} parent=11 // pred_check
          %p217 = pneg %p107
        $region22: #{tpu_custom_call.1} parent=11 // pred_check_branch
          %219 = sbr.rel (%p217) target = $region24
        $region23: #{tpu_custom_call.1} parent=11 // pred_region
          _
        $region24: #{tpu_custom_call.1} parent=11 // pred_fallthru
          _
        // Predicated region
        $region25: #{tpu_custom_call.1} parent=11 // pred_check
          %p220 = pneg %p128
        $region26: #{tpu_custom_call.1} parent=11 // pred_check_branch
          %222 = sbr.rel (%p220) target = $region28
        $region27: #{tpu_custom_call.1} parent=11 // pred_region
          _
        $region28: #{tpu_custom_call.1} parent=11 // pred_fallthru
          _
        // Predicated region
        $region29: #{tpu_custom_call.1} parent=11 // pred_check
          %p223 = pneg %p149
        $region30: #{tpu_custom_call.1} parent=11 // pred_check_branch
          %225 = sbr.rel (%p223) target = $region32
        $region31: #{tpu_custom_call.1} parent=11 // pred_region
          _
        $region32: #{tpu_custom_call.1} parent=11 // pred_fallthru
          _
        // Predicated region
        $region33: #{tpu_custom_call.1} parent=11 // pred_check
          %p226 = pneg %p170
        $region34: #{tpu_custom_call.1} parent=11 // pred_check_branch
          %228 = sbr.rel (%p226) target = $region36
        $region35: #{tpu_custom_call.1} parent=11 // pred_region
          _
        $region36: #{tpu_custom_call.1} parent=11 // pred_fallthru
          _
      $region12: #{tpu_custom_call.1} parent=5 // pred_fallthru
        _
      %p229 = scmp.lt.s32.totalorder %s18, 4
      // Predicated region
      $region37: #{tpu_custom_call.1} parent=5 // pred_check
        %p230 = pneg %p229
      $region38: #{tpu_custom_call.1} parent=5 // pred_check_branch
        %232 = sbr.rel (%p230) target = $region40
      $region39: #{tpu_custom_call.1} parent=5 // pred_region
        // Predicated region
        $region41: #{tpu_custom_call.1} parent=39 // pred_check
          %p233 = pneg %p38
        $region42: #{tpu_custom_call.1} parent=39 // pred_check_branch
          %235 = sbr.rel (%p233) target = $region44
        $region43: #{tpu_custom_call.1} parent=39 // pred_region
          %s236 = smul.u32 2, %s18
          %p237 = scmp.lt.s32.totalorder %s236, 7
          %s238 = scalar_select %p237, %s236, 7
          %s239 = smul.addr %s238, 2
          %s240 = scalar_lea.vmem %s0, %s239
          %s241 = smul.u32 2, %s18
        $region44: #{tpu_custom_call.1} parent=39 // pred_fallthru
          _
      $region40: #{tpu_custom_call.1} parent=5 // pred_fallthru
        _
      %p242 = scmp.le.s32.totalorder 1, %s18
      %p243 = scmp.lt.s32.totalorder %s18, 5
      %p244 = pnand %p242, %p243
      %p245 = pneg %p244
      // Predicated region
      $region45: #{tpu_custom_call.1} parent=5 // pred_check
        _
      $region46: #{tpu_custom_call.1} parent=5 // pred_check_branch
        %247 = sbr.rel (%p244) target = $region48
      $region47: #{tpu_custom_call.1} parent=5 // pred_region
        %s248 = ssub.s32 %s18, 1
        %s249 = smul.u32 2, %s23
        %p250 = scmp.lt.s32.totalorder %s249, 7
        %s251 = scalar_select %p250, %s249, 7
        %s252 = smul.addr %s251, 2
        %s253 = scalar_lea.vmem %s0, %s252
        %p254 = pneg %p44
        %p255 = pneg %p41
        %p256 = pneg %p65
        %p257 = pneg %p62
        %p258 = pneg %p86
        %p259 = pneg %p83
        %p260 = pneg %p107
        %p261 = pneg %p104
        %p262 = pneg %p128
        %p263 = pneg %p125
        %p264 = pneg %p149
        %p265 = pneg %p146
        %p266 = pneg %p170
        %p267 = pneg %p167
        %p268 = pneg %p196
        %p269 = pneg %p193
        %s270 = sand.u32 %s183, 1
        %s271 = scalar_lea.sflag [#allocation4], %s270
        %s272 = sand.u32 %s183, 1
        %s273 = smul.addr %s272, 2
        %s274 = scalar_lea.vmem [#allocation3], %s273
        %s275 = smul.u32 2, %s23
        %p276 = scmp.lt.s32.totalorder %s275, 7
        %s277 = scalar_select %p276, %s275, 7
        %s278 = smul.addr %s277, 2
        %s279 = scalar_lea.vmem %s0, %s278
        %s280 = smul.u32 2, %s23
        %s281 = smul.u32 2, %s23
        %v282 = vld [vmem:[%s279] sm:$0xf]
        %v283 = vld [vmem:[%s1] sm:$0xff]
        %v284 = vld [vmem:[%s1 + $0x8] sm:$0xff]
        %v285 = vld [vmem:[%s1 + $0x10] sm:$0xff]
        %v286 = vld [vmem:[%s1 + $0x18] sm:$0xff]
        %v287 = vld [vmem:[%s2] sm:$0xff]
        %v288 = vld [vmem:[%s2 + $0x8] sm:$0xff]
        %v289 = vld [vmem:[%s2 + $0x10] sm:$0xff]
        %v290 = vld [vmem:[%s2 + $0x18] sm:$0xff]
        %292 = vset.pattern.permute.xlu0 0
        %293 = vperm.xlu0 %292, %v283
        %v294 = vpop.permute.xlu0 %293
        %297 = vset.pattern.permute.xlu0 0
        %298 = vperm.xlu0 %297, %v284
        %v299 = vpop.permute.xlu0 %298
        %302 = vset.pattern.permute.xlu0 0
        %303 = vperm.xlu0 %302, %v285
        %v304 = vpop.permute.xlu0 %303
        %307 = vset.pattern.permute.xlu0 0
        %308 = vperm.xlu0 %307, %v286
        %v309 = vpop.permute.xlu0 %308
        %v312 = vperm.slane %v282, 0
        %v313 = vperm.slane %v282, 2
        %v316 = vperm.slane %v312, 0
        %v317 = vperm.slane %v313, 0
        %v318 = vmul.f32 %v294, %v316
        %v319 = vmul.f32 %v294, %v317
        %v320 = vmul.f32 %v299, %v316
        %v321 = vmul.f32 %v299, %v317
        %v322 = vmul.f32 %v304, %v316
        %v323 = vmul.f32 %v304, %v317
        %v324 = vmul.f32 %v309, %v316
        %v325 = vmul.f32 %v309, %v317
        %326 = vset.pattern.permute.xlu0 1
        %327 = vperm.xlu0 %326, %v283
        %v328 = vpop.permute.xlu0 %327
        %330 = vset.pattern.permute.xlu0 1
        %331 = vperm.xlu0 %330, %v284
        %v332 = vpop.permute.xlu0 %331
        %334 = vset.pattern.permute.xlu0 1
        %335 = vperm.xlu0 %334, %v285
        %v336 = vpop.permute.xlu0 %335
        %338 = vset.pattern.permute.xlu0 1
        %339 = vperm.xlu0 %338, %v286
        %v340 = vpop.permute.xlu0 %339
        %v342 = vperm.slane %v282, 1
        %v343 = vperm.slane %v282, 3
        %v346 = vperm.slane %v342, 1
        %v347 = vperm.slane %v343, 1
        %v348 = vmul.f32 %v328, %v346
        %v349 = vmul.f32 %v328, %v347
        %v350 = vmul.f32 %v332, %v346
        %v351 = vmul.f32 %v332, %v347
        %v352 = vmul.f32 %v336, %v346
        %v353 = vmul.f32 %v336, %v347
        %v354 = vmul.f32 %v340, %v346
        %v355 = vmul.f32 %v340, %v347
        %v356 = vadd.f32 %v318, %v348
        %v357 = vadd.f32 %v319, %v349
        %v358 = vadd.f32 %v320, %v350
        %v359 = vadd.f32 %v321, %v351
        %v360 = vadd.f32 %v322, %v352
        %v361 = vadd.f32 %v323, %v353
        %v362 = vadd.f32 %v324, %v354
        %v363 = vadd.f32 %v325, %v355
        %365 = vset.pattern.permute.xlu0 0
        %366 = vperm.xlu0 %365, %v287
        %v367 = vpop.permute.xlu0 %366
        %370 = vset.pattern.permute.xlu0 0
        %371 = vperm.xlu0 %370, %v288
        %v372 = vpop.permute.xlu0 %371
        %375 = vset.pattern.permute.xlu0 0
        %376 = vperm.xlu0 %375, %v289
        %v377 = vpop.permute.xlu0 %376
        %380 = vset.pattern.permute.xlu0 0
        %381 = vperm.xlu0 %380, %v290
        %v382 = vpop.permute.xlu0 %381
        %v384 = vadd.f32 %v356, %v367
        %v385 = vadd.f32 %v357, %v367
        %v386 = vadd.f32 %v358, %v372
        %v387 = vadd.f32 %v359, %v372
        %v388 = vadd.f32 %v360, %v377
        %v389 = vadd.f32 %v361, %v377
        %v390 = vadd.f32 %v362, %v382
        %v391 = vadd.f32 %v363, %v382
        %v392 = vtanh.pop %v384
        %v393 = vtanh.pop %v385
        %v394 = vtanh.pop %v386
        %v395 = vtanh.pop %v387
        %v396 = vtanh.pop %v388
        %v397 = vtanh.pop %v389
        %v398 = vtanh.pop %v390
        %v399 = vtanh.pop %v391
        %v400 = vld [vmem:[%s3] sm:$0xff]
        %v401 = vld [vmem:[%s3 + $0x8] sm:$0xff]
        %v402 = vld [vmem:[%s3 + $0x10] sm:$0xff]
        %v403 = vld [vmem:[%s3 + $0x18] sm:$0xff]
        %v404 = vld [vmem:[%s4] sm:$0xff]
        %v405 = vld [vmem:[%s4 + $0x8] sm:$0xff]
        %v406 = vld [vmem:[%s4 + $0x10] sm:$0xff]
        %v407 = vld [vmem:[%s4 + $0x18] sm:$0xff]
        %409 = vset.pattern.permute.xlu0 0
        %410 = vperm.xlu0 %409, %v404
        %v411 = vpop.permute.xlu0 %410
        %414 = vset.pattern.permute.xlu0 0
        %415 = vperm.xlu0 %414, %v405
        %v416 = vpop.permute.xlu0 %415
        %419 = vset.pattern.permute.xlu0 0
        %420 = vperm.xlu0 %419, %v406
        %v421 = vpop.permute.xlu0 %420
        %424 = vset.pattern.permute.xlu0 0
        %425 = vperm.xlu0 %424, %v407
        %v426 = vpop.permute.xlu0 %425
        %vm428 = vcmask 261120
        %v430 = vsel %vm428, %v400, 0
        %v433 = vsel %vm428, %v401, 0
        %v436 = vsel %vm428, %v402, 0
        %v439 = vsel %vm428, %v403, 0
        %441 = vmatpush.msra.mxu0 0.0
        %442 = vmatpush.msra.mxu0 0.0
        %443 = vmatpush.msra.mxu0 0.0
        %444 = vmatpush.msra.mxu0 0.0
        %445 = vmatpush.msra.mxu0 0.0
        %446 = vmatpush.msra.mxu0 0.0
        %447 = vmatpush.msra.mxu0 0.0
        %448 = vmatpush.msra.mxu0 0.0
        %449 = vmatpush.msra.mxu0 0.0
        %450 = vmatpush.msra.mxu0 0.0
        %451 = vmatpush.msra.mxu0 0.0
        %452 = vmatpush.msra.mxu0 0.0
        %453 = vmatpush.msra.mxu0 %v398
        %454 = vmatpush.msra.mxu0 %v396
        %455 = vmatpush.msra.mxu0 %v394
        %456 = vmatpush.msra.mxu0 %v392
        %457 = vmatmul.f32.gmra.mxu0 %v430
        %v458 = vpop.f32.mrf.mxu0
        %v459 = vadd.f32 %v411, %v458
        %460 = vmatmul.f32.gmra.mxu0 %v433
        %v461 = vpop.f32.mrf.mxu0
        %v462 = vadd.f32 %v416, %v461
        %463 = vmatmul.f32.gmra.mxu0 %v436
        %v464 = vpop.f32.mrf.mxu0
        %v465 = vadd.f32 %v421, %v464
        %466 = vmatmul.f32.gmra.mxu0 %v439
        %v467 = vpop.f32.mrf.mxu0
        %v468 = vadd.f32 %v426, %v467
        %469 = vdwg.mxu0
        %470 = vmatpush.msra.mxu0 0.0
        %471 = vmatpush.msra.mxu0 0.0
        %472 = vmatpush.msra.mxu0 0.0
        %473 = vmatpush.msra.mxu0 0.0
        %474 = vmatpush.msra.mxu0 0.0
        %475 = vmatpush.msra.mxu0 0.0
        %476 = vmatpush.msra.mxu0 0.0
        %477 = vmatpush.msra.mxu0 0.0
        %478 = vmatpush.msra.mxu0 0.0
        %479 = vmatpush.msra.mxu0 0.0
        %480 = vmatpush.msra.mxu0 0.0
        %481 = vmatpush.msra.mxu0 0.0
        %482 = vmatpush.msra.mxu0 %v399
        %483 = vmatpush.msra.mxu0 %v397
        %484 = vmatpush.msra.mxu0 %v395
        %485 = vmatpush.msra.mxu0 %v393
        %486 = vmatmul.f32.gmra.mxu0 %v430
        %v487 = vpop.f32.mrf.mxu0
        %v488 = vadd.f32 %v411, %v487
        %489 = vmatmul.f32.gmra.mxu0 %v433
        %v490 = vpop.f32.mrf.mxu0
        %v491 = vadd.f32 %v416, %v490
        %492 = vmatmul.f32.gmra.mxu0 %v436
        %v493 = vpop.f32.mrf.mxu0
        %v494 = vadd.f32 %v421, %v493
        %495 = vmatmul.f32.gmra.mxu0 %v439
        %v496 = vpop.f32.mrf.mxu0
        %v497 = vadd.f32 %v426, %v496
        %498 = vdwg.mxu0
        %v499 = vtanh.pop %v459
        %v500 = vtanh.pop %v488
        %v501 = vtanh.pop %v462
        %v502 = vtanh.pop %v491
        %v503 = vtanh.pop %v465
        %v504 = vtanh.pop %v494
        %v505 = vtanh.pop %v468
        %v506 = vtanh.pop %v497
        %v507 = vld [vmem:[%s5] sm:$0x1]
        %v508 = vld [vmem:[#allocation2] sm:$0x1]
        %509 = vxpose.xlu0.b32.start [1/16] %v507, 128
        %510 = vxpose.xlu0.b32.cont [2/16] 0.0, 128
        %511 = vxpose.xlu0.b32.cont [3/16] 0.0, 128
        %512 = vxpose.xlu0.b32.cont [4/16] 0.0, 128
        %513 = vxpose.xlu0.b32.cont [5/16] 0.0, 128
        %514 = vxpose.xlu0.b32.cont [6/16] 0.0, 128
        %515 = vxpose.xlu0.b32.cont [7/16] 0.0, 128
        %516 = vxpose.xlu0.b32.cont [8/16] 0.0, 128
        %517 = vxpose.xlu0.b32.cont [9/16] 0.0, 128
        %518 = vxpose.xlu0.b32.cont [10/16] 0.0, 128
        %519 = vxpose.xlu0.b32.cont [11/16] 0.0, 128
        %520 = vxpose.xlu0.b32.cont [12/16] 0.0, 128
        %521 = vxpose.xlu0.b32.cont [13/16] 0.0, 128
        %522 = vxpose.xlu0.b32.cont [14/16] 0.0, 128
        %523 = vxpose.xlu0.b32.cont [15/16] 0.0, 128
        %524 = vxpose.xlu0.b32.end [16/16] 0.0, 128
        %v525 = vpop.trf.xlu0
        %v526 = vpop.trf.xlu0
        %v527 = vpop.trf.xlu0
        %v528 = vpop.trf.xlu0
        %v529 = vpop.trf.xlu0
        %v530 = vpop.trf.xlu0
        %v531 = vpop.trf.xlu0
        %v532 = vpop.trf.xlu0
        %v533 = vpop.trf.xlu0
        %v534 = vpop.trf.xlu0
        %v535 = vpop.trf.xlu0
        %v536 = vpop.trf.xlu0
        %v537 = vpop.trf.xlu0
        %v538 = vpop.trf.xlu0
        %v539 = vpop.trf.xlu0
        %v540 = vpop.trf.xlu0
        %542 = vset.pattern.permute.xlu0 0
        %543 = vperm.xlu0 %542, %v525
        %v544 = vpop.permute.xlu0 %543
        %547 = vset.pattern.permute.xlu0 0
        %548 = vperm.xlu0 %547, %v526
        %v549 = vpop.permute.xlu0 %548
        %552 = vset.pattern.permute.xlu0 0
        %553 = vperm.xlu0 %552, %v527
        %v554 = vpop.permute.xlu0 %553
        %557 = vset.pattern.permute.xlu0 0
        %558 = vperm.xlu0 %557, %v528
        %v559 = vpop.permute.xlu0 %558
        %v561 = vmul.f32 %v544, %v499
        %v562 = vmul.f32 %v544, %v500
        %v563 = vmul.f32 %v549, %v501
        %v564 = vmul.f32 %v549, %v502
        %v565 = vmul.f32 %v554, %v503
        %v566 = vmul.f32 %v554, %v504
        %v567 = vmul.f32 %v559, %v505
        %v568 = vmul.f32 %v559, %v506
        %v569 = vadd.f32 %v561, %v563
        %v570 = vadd.f32 %v569, %v565
        %v571 = vadd.f32 %v570, %v567
        %v572 = vrot.slane %v571, 4
        %v573 = vadd.f32 %v571, %v572
        %v574 = vrot.slane %v573, 2
        %v575 = vadd.f32 %v573, %v574
        %v576 = vrot.slane %v575, 1
        %v577 = vadd.f32 %v575, %v576
        %v578 = vadd.f32 %v562, %v564
        %v579 = vadd.f32 %v578, %v566
        %v580 = vadd.f32 %v579, %v568
        %v581 = vrot.slane %v580, 4
        %v582 = vadd.f32 %v580, %v581
        %v583 = vrot.slane %v582, 2
        %v584 = vadd.f32 %v582, %v583
        %v585 = vrot.slane %v584, 1
        %v586 = vadd.f32 %v584, %v585
        %588 = vset.pattern.permute.xlu0 0
        %589 = vperm.xlu0 %588, %v508
        %v590 = vpop.permute.xlu0 %589
        %v592 = vperm.slane %v590, 0
        %v593 = vadd.f32 %v577, %v592
        %v594 = vadd.f32 %v586, %v592
        %v597 = vrot.slane %v594, 7
        %vm598 = vcmask 1040384
        %v599 = vsel %vm598, %v593, %v597
        %v601 = vlaneseq
        %vm602 = vcmp.ge.s32.totalorder %v601, 0
        %vm603 = vcmp.lt.s32.totalorder %v601, 256
        %vm604 = vmand %vm602, %vm603
        %605 = vst.msk [vmem:[%s274] sm:$0x3] %vm604, %v599
        %s606 = sand.u32 %s183, 1
        %s607 = scalar_lea.sflag [#allocation4], %s606
        %s608 = sand.u32 %s183, 1
        %s609 = smul.addr %s608, 2
        %s610 = scalar_lea.vmem [#allocation3], %s609
        // Predicated region
        $region49: #{tpu_custom_call.1} parent=47 // pred_check
          %p611 = pneg %p193
        $region50: #{tpu_custom_call.1} parent=47 // pred_check_branch
          %613 = sbr.rel (%p611) target = $region52
        $region51: #{tpu_custom_call.1} parent=47 // pred_region
          %s614 = smul.u32 2, %s23
          %616 = vsyncadd %s607, 0
          %s617 = scalar_lea.hbm %s7, %s614
          %s619 = sshll.u32 %s610, 4
          %s620 = int_to_ptr.vmem [resolvable:$true] %s619
          %s621 = sshll.u32 %s617, 4
          %s622 = int_to_ptr.hbm [resolvable:$true] %s621
          %624 = dma.vmem_to_hbm [thread:$0]  %s620, 32, %s622, %s607
        $region52: #{tpu_custom_call.1} parent=47 // pred_fallthru
          _
      $region48: #{tpu_custom_call.1} parent=5 // pred_fallthru
        _
      %p625 = scmp.le.s32.totalorder 2, %s18
      // Predicated region
      $region53: #{tpu_custom_call.1} parent=5 // pred_check
        %p626 = pneg %p625
      $region54: #{tpu_custom_call.1} parent=5 // pred_check_branch
        %628 = sbr.rel (%p626) target = $region56
      $region55: #{tpu_custom_call.1} parent=5 // pred_region
        %s629 = ssub.s32 %s18, 2
        // Predicated region
        $region57: #{tpu_custom_call.1} parent=55 // pred_check
          %p630 = pneg %p199
        $region58: #{tpu_custom_call.1} parent=55 // pred_check_branch
          %632 = sbr.rel (%p630) target = $region60
        $region59: #{tpu_custom_call.1} parent=55 // pred_region
          %s633 = sand.u32 %s184, 1
          %s634 = scalar_lea.sflag [#allocation4], %s633
          %s635 = sand.u32 %s184, 1
          %s636 = smul.addr %s635, 2
          %s637 = scalar_lea.vmem [#allocation3], %s636
          %639 = dma.done %s634, 32
        $region60: #{tpu_custom_call.1} parent=55 // pred_fallthru
          _
      $region56: #{tpu_custom_call.1} parent=5 // pred_fallthru
        _
    $region6: #{tpu_custom_call.1} parent=1 // loop_footer
      %s22 = sadd.s32 1, %s18
    $region7: #{tpu_custom_call.1} parent=1 // loop_footer_branch
      %17 = sbr.rel target = $region3
    $region8: #{tpu_custom_call.1} parent=1 // loop_exit
      _
    %640 = vsyncpa [#allocation4], 1
    %s641 = scalar_lea.sflag [#allocation4], 1
    %642 = vsyncpa %s641, 1

</llo_original>
